<compile_context>
chip_gen: v5e
topology: v5e:2x2
jax: 0.10.0
libtpu: 0.0.40
codegen_flags: <defaults>
</compile_context>

<pallas_src>
import jax
import jax.numpy as jnp
from jax.experimental import pallas as pl
from jax.experimental.pallas import tpu as pltpu

_LANE = 128


def _make_func_kernel(func):
    """Build the Pallas kernel body applying `func` elementwise to one block."""
    def kernel(x_ref, o_ref):
        o_ref[...] = func(x_ref[...]).astype(o_ref.dtype)
    return kernel


def _sublane_align(dtype) -> int:
    # Sub-32-bit dtypes pack along sublanes: bf16 -> 16 rows/vreg, int8/fp8 -> 32.
    itemsize = jnp.dtype(dtype).itemsize
    return max(8, (4 // max(itemsize, 1)) * 8)


def pallas_func_module(func, target_block_bytes=2 * 1024 * 1024):
    """Return a callable equivalent to FuncModule(func).forward.

    `func` must be elementwise: the kernel tiles a flattened lane-dense slab,
    which would silently change semantics for reductions / cross-element funcs.
    """
    kernel = _make_func_kernel(func)

    def forward(x):
        orig_shape = x.shape
        dtype = x.dtype
        itemsize = jnp.dtype(dtype).itemsize
        align = _sublane_align(dtype)

        flat = x.reshape(-1)
        n = flat.shape[0]

        # Lane-dense (rows, 128) slab. Pad ONLY when n isn't a multiple of the
        # lane width; row count needs no alignment — the ragged final grid
        # block is masked by Pallas.
        pad = (-n) % _LANE
        if pad:
            # TODO(synk): tail-only copy instead of full-tensor pad when n % 128 != 0.
            flat = jnp.pad(flat, (0, pad))
        rows = flat.shape[0] // _LANE
        slab = flat.reshape(rows, _LANE)

        # ~2 MiB per block (dtype-aware sublane-aligned row count), capped at
        # the (aligned) total row count so tiny inputs don't over-allocate VMEM.
        tr = max(align, (target_block_bytes // (_LANE * itemsize)) // align * align)
        rows_aligned = ((rows + align - 1) // align) * align
        tr = min(tr, rows_aligned)
        grid = (pl.cdiv(rows, tr),)

        cost = pl.CostEstimate(
            flops=8 * n,
            transcendentals=n,
            bytes_accessed=2 * n * itemsize,
        )

        out = pl.pallas_call(
            kernel,
            out_shape=jax.ShapeDtypeStruct((rows, _LANE), dtype),
            grid_spec=pltpu.PrefetchScalarGridSpec(
                num_scalar_prefetch=0,
                grid=grid,
                in_specs=[pl.BlockSpec((tr, _LANE), lambda i: (i, 0))],
                out_specs=pl.BlockSpec((tr, _LANE), lambda i: (i, 0)),
            ),
            compiler_params=pltpu.CompilerParams(
                dimension_semantics=("parallel",),
            ),
            cost_estimate=cost,
        )(slab)

        flat_out = out.reshape(-1)
        if pad:
            flat_out = flat_out[:n]
        return flat_out.reshape(orig_shape)

    return forward


if __name__ == "__main__":
    # FuncModule has no parameters; only the wrapped function matters.
    # Instantiate with a representative elementwise func (GELU).
    func = jax.nn.gelu
    module = pallas_func_module(func)

    key = jax.random.PRNGKey(0)
    x = jax.random.normal(key, (2, 4, 16, 16), dtype=jnp.float32)  # NCHW

    y = module(x)
    y = jax.block_until_ready(y)

    # Reference check against plain JAX application of the same func.
    y_ref = func(x)
    assert y.shape == x.shape and y.dtype == x.dtype
    assert jnp.allclose(y, y_ref, atol=1e-5, rtol=1e-5)

    print("KERNEL_OK")
</pallas_src>

<mosaic_0001>
module attributes {stable_mosaic.version = 11 : i64} {
  func.func @kernel(%arg0: i32, %arg1: memref<16x128xf32, #tpu.memory_space<vmem>>, %arg2: memref<16x128xf32, #tpu.memory_space<vmem>>) attributes {dimension_semantics = [#tpu.dimension_semantics<parallel>], iteration_bounds = array<i64: 1>, scalar_prefetch = 0 : i64, scratch_operands = 0 : i64, tpu.core_type = #tpu.core_type<tc>, window_params = [{transform_indices = @transform_0, window_bounds = array<i64: 16, 128>}, {transform_indices = @transform_1, window_bounds = array<i64: 16, 128>}]} {
    %c0 = arith.constant 0 : index
    %c0_0 = arith.constant 0 : index
    %0 = vector.load %arg1[%c0, %c0_0] : memref<16x128xf32, #tpu.memory_space<vmem>>, vector<16x128xf32>
    %1 = arith.mulf %0, %0 : vector<16x128xf32>
    %2 = arith.mulf %0, %1 : vector<16x128xf32>
    %cst = arith.constant 4.471500e-02 : f32
    %3 = vector.broadcast %cst : f32 to vector<16x128xf32>
    %4 = arith.mulf %3, %2 : vector<16x128xf32>
    %5 = arith.addf %0, %4 : vector<16x128xf32>
    %cst_1 = arith.constant 0.797884583 : f32
    %6 = vector.broadcast %cst_1 : f32 to vector<16x128xf32>
    %7 = arith.mulf %6, %5 : vector<16x128xf32>
    %8 = math.tanh %7 : vector<16x128xf32>
    %cst_2 = arith.constant 1.000000e+00 : f32
    %9 = vector.broadcast %cst_2 : f32 to vector<16x128xf32>
    %10 = arith.addf %9, %8 : vector<16x128xf32>
    %cst_3 = arith.constant 5.000000e-01 : f32
    %11 = vector.broadcast %cst_3 : f32 to vector<16x128xf32>
    %12 = arith.mulf %11, %10 : vector<16x128xf32>
    %13 = arith.mulf %0, %12 : vector<16x128xf32>
    %c0_4 = arith.constant 0 : index
    %c0_5 = arith.constant 0 : index
    %14 = vector.load %arg2[%c0_4, %c0_5] : memref<16x128xf32, #tpu.memory_space<vmem>>, vector<16x128xf32>
    tpu.vector_store %arg2[%c0_4, %c0_5], %13 {strides = array<i32>} : memref<16x128xf32, #tpu.memory_space<vmem>>, vector<16x128xf32>,
    return
  }
  func.func @transform_0(%arg0: i32) -> (i32, i32) {
    %c0_i32 = arith.constant 0 : i32
    %c0_i32_0 = arith.constant 0 : i32
    return %arg0, %c0_i32 : i32, i32
  }
  func.func @transform_1(%arg0: i32) -> (i32, i32) {
    %c0_i32 = arith.constant 0 : i32
    %c0_i32_0 = arith.constant 0 : i32
    return %arg0, %c0_i32 : i32, i32
  }
}

</mosaic_0001>

<llo_original>
// kernel: tpu_custom_call.1
$region0: #{tpu_custom_call.1}
  #allocation0 [shape = 'u32[]', space=smem, size = 0x4, offset = 0x4, fixed_abs, tag = 'smem constant byte address 0x4 - core index']
  #allocation1 [shape = 'u32[72,128]{1,0:T(1,128)}', space=vmem, size = 0x9000, scoped, tag = 'internal scratch']
  %s0 = inlined_call_operand.hbm [shape: f32[16,128], index: 0, kind: input, shape index: {}]
  %s1 = inlined_call_operand.hbm [shape: f32[16,128], index: 1, kind: output, shape index: {}]
  %s2 = sld [smem:[#allocation0]]
  $region18: #{tpu_custom_call.1} parent=0
    _
  %s4 = ssub.s32 1, %s2
  %s5 = scalar_select 0, %s4, %s2
  $region1: #{tpu_custom_call.1} parent=0
    #allocation2 [shape = 'u8[8192]{0}', space=vmem, size = 0x2000, scoped, tag = 'input window, operand 0, single buffered']
    #allocation3 [shape = 's32[1]{0}', space=sflag, size = 0x4, scoped, tag = 'scoped memory for tpu_custom_call.1']
    #allocation4 [shape = 's32[1]{0}', space=sflag, size = 0x4, scoped, tag = 'scoped memory for tpu_custom_call.1']
    #allocation5 [shape = 'u8[8192]{0}', space=vmem, size = 0x2000, scoped, tag = 'output window, operand 0, single buffered']
    %6 = vsyncpa [#allocation3], 0
    %7 = vsyncpa [#allocation4], 0
    // Predicated region
    $region2: #{tpu_custom_call.1} parent=1 // pred_check
      _
    $region3: #{tpu_custom_call.1} parent=1 // pred_check_branch
      %9 = sbr.rel (0) target = $region5
    $region4: #{tpu_custom_call.1} parent=1 // pred_region
      %11 = vsyncadd [#allocation3], 0
      %s12 = sshll.u32 %s0, 4
      %s13 = int_to_ptr.hbm [resolvable:$true] %s12
      %s14 = sshll.u32 [#allocation2], 4
      %s15 = int_to_ptr.vmem [resolvable:$true] %s14
      %20 = dma.hbm_to_vmem [thread:$0]  %s13, 256, %s15, [#allocation3], 128, 128, 8
    $region5: #{tpu_custom_call.1} parent=1 // pred_fallthru
      _
    // Predicated region
    $region6: #{tpu_custom_call.1} parent=1 // pred_check
      _
    $region7: #{tpu_custom_call.1} parent=1 // pred_check_branch
      %22 = sbr.rel (0) target = $region9
    $region8: #{tpu_custom_call.1} parent=1 // pred_region
      %24 = dma.done [#allocation3], 256
    $region9: #{tpu_custom_call.1} parent=1 // pred_fallthru
      _
    %v25 = vld [vmem:[#allocation2] sm:$0xff]
    %v26 = vld [vmem:[#allocation2 + $0x8] sm:$0xff]
    %v27 = vmul.f32 %v25, %v25
    %v28 = vmul.f32 %v26, %v26
    %v29 = vmul.f32 %v25, %v27
    %v30 = vmul.f32 %v26, %v28
    %v31 = vmul.f32 %v29, 0.044715
    %v32 = vmul.f32 %v30, 0.044715
    %v33 = vadd.f32 %v25, %v31
    %v34 = vadd.f32 %v26, %v32
    %v35 = vmul.f32 %v33, 0.7978846
    %v36 = vmul.f32 %v34, 0.7978846
    %v37 = vtanh.pop %v35
    %v38 = vtanh.pop %v36
    %v39 = vadd.f32 %v37, 1.0
    %v40 = vadd.f32 %v38, 1.0
    %v41 = vmul.f32 %v39, 0.5
    %v42 = vmul.f32 %v40, 0.5
    %v43 = vmul.f32 %v25, %v41
    %v44 = vmul.f32 %v26, %v42
    %45 = vst [vmem:[#allocation5] sm:$0xff] %v43
    %46 = vst [vmem:[#allocation5 + $0x8] sm:$0xff] %v44
    // Predicated region
    $region10: #{tpu_custom_call.1} parent=1 // pred_check
      _
    $region11: #{tpu_custom_call.1} parent=1 // pred_check_branch
      %48 = sbr.rel (0) target = $region13
    $region12: #{tpu_custom_call.1} parent=1 // pred_region
      %50 = vsyncadd [#allocation4], 0
      %s51 = sshll.u32 [#allocation5], 4
      %s52 = int_to_ptr.vmem [resolvable:$true] %s51
      %s53 = sshll.u32 %s1, 4
      %s54 = int_to_ptr.hbm [resolvable:$true] %s53
      %59 = dma.vmem_to_hbm [thread:$0]  %s52, 256, %s54, [#allocation4], 128, 128, 8
    $region13: #{tpu_custom_call.1} parent=1 // pred_fallthru
      _
    // Predicated region
    $region14: #{tpu_custom_call.1} parent=1 // pred_check
      _
    $region15: #{tpu_custom_call.1} parent=1 // pred_check_branch
      %61 = sbr.rel (0) target = $region17
    $region16: #{tpu_custom_call.1} parent=1 // pred_region
      %63 = dma.done [#allocation4], 256
    $region17: #{tpu_custom_call.1} parent=1 // pred_fallthru
      _
    %64 = vsyncpa [#allocation3], 1
    %65 = vsyncpa [#allocation4], 1

</llo_original>
